<compile_context>
chip_gen: v7x
topology: tpu7x:2x2x1
jax: 0.10.0
libtpu: 0.0.40
codegen_flags: <defaults>
</compile_context>

<pallas_src>
from functools import partial

import jax
import jax.numpy as jnp
from jax.experimental import pallas as pl
from jax.experimental.pallas import tpu as pltpu

_LANE = 128    # hidden (contraction) dim padded to a multiple of this for the MXU
_SUBLANE = 8   # f32 sublane multiple for the batch tile


def _round_up(n, m):
    return ((n + m - 1) // m) * m


def _simplenet_kernel(x_ref, w1_ref, b1_ref, w2_ref, b2_ref, o_ref):
    # linear1 on MXU: (TB, In) @ (In, Hp) + (1, Hp)
    h = jnp.dot(x_ref[...], w1_ref[...], preferred_element_type=jnp.float32)
    # act1: sigmoid (EUP)
    h = jax.nn.sigmoid(h + b1_ref[...])
    # linear2 on MXU: (TB, Hp) @ (Hp, num_out) + (1, num_out); f32 throughout
    y = jnp.dot(h, w2_ref[...], preferred_element_type=jnp.float32) + b2_ref[...]
    # act2: LeakyReLU (PyTorch default negative_slope = 0.01)
    o_ref[...] = jnp.where(y >= 0, y, 0.01 * y).astype(o_ref.dtype)


def pad_simplenet_params(w1, b1, w2, b2):
    """One-time (init-time) padding of the hidden dim to a lane multiple.

    w1: (num_in, H); b1: (H,) or (1, H); w2: (H, num_out); b2: (num_out,) or (1, num_out).
    Zero-padded b1 lanes and zero-padded w2 rows keep the padded math exact.
    """
    num_in, H = w1.shape
    num_out = w2.shape[1]
    Hp = _round_up(H, _LANE)
    w1p = jnp.zeros((num_in, Hp), w1.dtype).at[:, :H].set(w1)
    b1p = jnp.zeros((1, Hp), b1.dtype).at[:, :H].set(jnp.reshape(b1, (1, H)))
    w2p = jnp.zeros((Hp, num_out), w2.dtype).at[:H, :].set(w2)
    b2p = jnp.reshape(b2, (1, num_out))
    return w1p, b1p, w2p, b2p


@partial(jax.jit, static_argnames=("block_batch",))
def simplenet_forward(x, w1p, b1p, w2p, b2p, *, block_batch=2048):
    """x: (B, num_in); padded params from pad_simplenet_params()."""
    B, num_in = x.shape
    Hp = w1p.shape[1]
    num_out = w2p.shape[1]

    # Batch tile: multiple of the f32 sublane count (8) regardless of the hint,
    # capped so there are >= 2 batch tiles whenever B allows it (v7x: 2 TCs).
    bb = max(_SUBLANE, _round_up(block_batch, _SUBLANE))
    cap = max(_SUBLANE, _round_up(-(-B // 2), _SUBLANE))
    TB = min(bb, cap)
    grid = (pl.cdiv(B, TB),)   # ragged last tile handled by Pallas edge masking

    out = pl.pallas_call(
        _simplenet_kernel,
        out_shape=jax.ShapeDtypeStruct((B, num_out), x.dtype),
        grid_spec=pl.GridSpec(
            grid=grid,
            in_specs=[
                pl.BlockSpec((TB, num_in), lambda i: (i, 0)),    # x: tiled on batch
                pl.BlockSpec((num_in, Hp), lambda i: (0, 0)),    # w1: VMEM-resident
                pl.BlockSpec((1, Hp), lambda i: (0, 0)),         # b1: VMEM-resident
                pl.BlockSpec((Hp, num_out), lambda i: (0, 0)),   # w2: VMEM-resident
                pl.BlockSpec((1, num_out), lambda i: (0, 0)),    # b2: VMEM-resident
            ],
            out_specs=pl.BlockSpec((TB, num_out), lambda i: (i, 0)),
        ),
        compiler_params=pltpu.CompilerParams(
            dimension_semantics=("parallel",)),  # independent batch tiles
    )(x, w1p, b1p, w2p, b2p)
    return out


def _init_linear(key, fan_in, fan_out):
    """Deterministic init mimicking nn.Linear's uniform(-1/sqrt(fan_in), +)."""
    kw, kb = jax.random.split(key)
    bound = 1.0 / jnp.sqrt(fan_in)
    # stored transposed as (in, out) so the kernel computes x @ W
    w = jax.random.uniform(kw, (fan_in, fan_out), jnp.float32, -bound, bound)
    b = jax.random.uniform(kb, (1, fan_out), jnp.float32, -bound, bound)
    return w, b


def simplenet_reference(x, w1, b1, w2, b2):
    h = jax.nn.sigmoid(x @ w1 + b1)
    y = h @ w2 + b2
    return jnp.where(y >= 0, y, 0.01 * y)


if __name__ == "__main__":
    key = jax.random.PRNGKey(0)
    k_x, k_x2, k_l1, k_l2 = jax.random.split(key, 4)

    batch = 8
    num_inputs = 16
    num_hidden = 32
    num_outputs = 4

    w1, b1 = _init_linear(k_l1, num_inputs, num_hidden)
    w2, b2 = _init_linear(k_l2, num_hidden, num_outputs)
    # Parameter padding hoisted out of the per-call path (done once at init).
    w1p, b1p, w2p, b2p = pad_simplenet_params(w1, b1, w2, b2)

    # Small demo shape matching the module.
    x = jax.random.normal(k_x, (batch, num_inputs), jnp.float32)
    out = jax.block_until_ready(simplenet_forward(x, w1p, b1p, w2p, b2p))
    ref = simplenet_reference(x, w1, b1, w2, b2)
    assert out.shape == (batch, num_outputs)
    assert jnp.allclose(out, ref, atol=1e-5, rtol=1e-5)

    # Extra check: larger ragged batch exercising multiple tiles + masked edge.
    x2 = jax.random.normal(k_x2, (1000, num_inputs), jnp.float32)
    out2 = jax.block_until_ready(simplenet_forward(x2, w1p, b1p, w2p, b2p))
    ref2 = simplenet_reference(x2, w1, b1, w2, b2)
    assert out2.shape == (1000, num_outputs)
    assert jnp.allclose(out2, ref2, atol=1e-5, rtol=1e-5)

    print("KERNEL_OK")
</pallas_src>

<mosaic_0001>
module attributes {stable_mosaic.version = 11 : i64} {
  func.func @_simplenet_kernel(%arg0: i32, %arg1: memref<8x16xf32, #tpu.memory_space<vmem>>, %arg2: memref<16x128xf32, #tpu.memory_space<vmem>>, %arg3: memref<1x128xf32, #tpu.memory_space<vmem>>, %arg4: memref<128x4xf32, #tpu.memory_space<vmem>>, %arg5: memref<1x4xf32, #tpu.memory_space<vmem>>, %arg6: memref<8x4xf32, #tpu.memory_space<vmem>>) attributes {dimension_semantics = [#tpu.dimension_semantics<parallel>], iteration_bounds = array<i64: 1>, scalar_prefetch = 0 : i64, scratch_operands = 0 : i64, tpu.core_type = #tpu.core_type<tc>, window_params = [{transform_indices = @transform_0, window_bounds = array<i64: 8, 16>}, {pipeline_mode = #tpu.pipeline_mode<synchronous>, transform_indices = @transform_1, window_bounds = array<i64: 16, 128>}, {pipeline_mode = #tpu.pipeline_mode<synchronous>, transform_indices = @transform_2, window_bounds = array<i64: 1, 128>}, {pipeline_mode = #tpu.pipeline_mode<synchronous>, transform_indices = @transform_3, window_bounds = array<i64: 128, 4>}, {pipeline_mode = #tpu.pipeline_mode<synchronous>, transform_indices = @transform_4, window_bounds = array<i64: 1, 4>}, {transform_indices = @transform_5, window_bounds = array<i64: 8, 4>}]} {
    %c0 = arith.constant 0 : index
    %c0_0 = arith.constant 0 : index
    %0 = vector.load %arg1[%c0, %c0_0] : memref<8x16xf32, #tpu.memory_space<vmem>>, vector<8x16xf32>
    %c0_1 = arith.constant 0 : index
    %c0_2 = arith.constant 0 : index
    %1 = vector.load %arg2[%c0_1, %c0_2] : memref<16x128xf32, #tpu.memory_space<vmem>>, vector<16x128xf32>
    %cst = arith.constant dense<0.000000e+00> : vector<8x128xf32>
    %2 = tpu.matmul %0, %1, %cst {dimension_numbers = #tpu.dot_dimension_numbers<[1], [0], [0], [1], [0, 0, 1, 1], [], []>} : vector<8x16xf32>, vector<16x128xf32>, vector<8x128xf32> -> vector<8x128xf32>
    %c0_3 = arith.constant 0 : index
    %c0_4 = arith.constant 0 : index
    %3 = vector.load %arg3[%c0_3, %c0_4] : memref<1x128xf32, #tpu.memory_space<vmem>>, vector<1x128xf32>
    %4 = vector.broadcast %3 : vector<1x128xf32> to vector<8x128xf32>
    %5 = arith.addf %2, %4 : vector<8x128xf32>
    %6 = arith.negf %5 : vector<8x128xf32>
    %7 = math.exp %6 : vector<8x128xf32>
    %cst_5 = arith.constant 1.000000e+00 : f32
    %8 = vector.broadcast %cst_5 : f32 to vector<8x128xf32>
    %9 = arith.addf %8, %7 : vector<8x128xf32>
    %10 = arith.divf %8, %9 : vector<8x128xf32>
    %c0_6 = arith.constant 0 : index
    %c0_7 = arith.constant 0 : index
    %11 = vector.load %arg4[%c0_6, %c0_7] : memref<128x4xf32, #tpu.memory_space<vmem>>, vector<128x4xf32>
    %cst_8 = arith.constant dense<0.000000e+00> : vector<8x4xf32>
    %12 = tpu.matmul %10, %11, %cst_8 {dimension_numbers = #tpu.dot_dimension_numbers<[1], [0], [0], [1], [0, 0, 1, 1], [], []>} : vector<8x128xf32>, vector<128x4xf32>, vector<8x4xf32> -> vector<8x4xf32>
    %c0_9 = arith.constant 0 : index
    %c0_10 = arith.constant 0 : index
    %13 = vector.load %arg5[%c0_9, %c0_10] : memref<1x4xf32, #tpu.memory_space<vmem>>, vector<1x4xf32>
    %14 = vector.broadcast %13 : vector<1x4xf32> to vector<8x4xf32>
    %15 = arith.addf %12, %14 : vector<8x4xf32>
    %cst_11 = arith.constant 0.000000e+00 : f32
    %16 = vector.broadcast %cst_11 : f32 to vector<8x4xf32>
    %17 = arith.cmpf oge, %15, %16 : vector<8x4xf32>
    %cst_12 = arith.constant 0.00999999977 : f32
    %18 = vector.broadcast %cst_12 : f32 to vector<8x4xf32>
    %19 = arith.mulf %18, %15 : vector<8x4xf32>
    %20 = arith.select %17, %15, %19 : vector<8x4xi1>, vector<8x4xf32>
    %c0_13 = arith.constant 0 : index
    %c0_14 = arith.constant 0 : index
    %21 = vector.load %arg6[%c0_13, %c0_14] : memref<8x4xf32, #tpu.memory_space<vmem>>, vector<8x4xf32>
    tpu.vector_store %arg6[%c0_13, %c0_14], %20 {strides = array<i32>} : memref<8x4xf32, #tpu.memory_space<vmem>>, vector<8x4xf32>,
    return
  }
  func.func @transform_0(%arg0: i32) -> (i32, i32) {
    %c0_i32 = arith.constant 0 : i32
    %c0_i32_0 = arith.constant 0 : i32
    return %arg0, %c0_i32 : i32, i32
  }
  func.func @transform_1(%arg0: i32) -> (i32, i32) {
    %c0_i32 = arith.constant 0 : i32
    %c0_i32_0 = arith.constant 0 : i32
    %c0_i32_1 = arith.constant 0 : i32
    return %c0_i32, %c0_i32_0 : i32, i32
  }
  func.func @transform_2(%arg0: i32) -> (i32, i32) {
    %c0_i32 = arith.constant 0 : i32
    %c0_i32_0 = arith.constant 0 : i32
    %c0_i32_1 = arith.constant 0 : i32
    return %c0_i32, %c0_i32_0 : i32, i32
  }
  func.func @transform_3(%arg0: i32) -> (i32, i32) {
    %c0_i32 = arith.constant 0 : i32
    %c0_i32_0 = arith.constant 0 : i32
    %c0_i32_1 = arith.constant 0 : i32
    return %c0_i32, %c0_i32_0 : i32, i32
  }
  func.func @transform_4(%arg0: i32) -> (i32, i32) {
    %c0_i32 = arith.constant 0 : i32
    %c0_i32_0 = arith.constant 0 : i32
    %c0_i32_1 = arith.constant 0 : i32
    return %c0_i32, %c0_i32_0 : i32, i32
  }
  func.func @transform_5(%arg0: i32) -> (i32, i32) {
    %c0_i32 = arith.constant 0 : i32
    %c0_i32_0 = arith.constant 0 : i32
    return %arg0, %c0_i32 : i32, i32
  }
}

</mosaic_0001>

<llo_original>
// kernel: simplenet_forward.1
$region0: #{simplenet_forward.1}
  #allocation0 [shape = 'u32[]', space=smem, size = 0x4, offset = 0x4, fixed_abs, tag = 'smem constant byte address 0x4 - core index']
  #allocation1 [shape = 'u32[144,128]{1,0:T(1,128)}', space=vmem, size = 0x12000, scoped, tag = 'internal scratch']
  %s0 = inlined_call_operand.vmem [shape: f32[8,16], index: 0, kind: input, shape index: {}]
  %s1 = inlined_call_operand.vmem [shape: f32[16,128], index: 1, kind: input, shape index: {}]
  %s2 = inlined_call_operand.vmem [shape: f32[1,128], index: 2, kind: input, shape index: {}]
  %s3 = inlined_call_operand.vmem [shape: f32[128,4], index: 3, kind: input, shape index: {}]
  %s4 = inlined_call_operand.vmem [shape: f32[1,4], index: 4, kind: input, shape index: {}]
  %s5 = inlined_call_operand.vmem [shape: f32[8,4], index: 5, kind: output, shape index: {}]
  %s6 = sld [smem:[#allocation0]]
  $region30: #{simplenet_forward.1} parent=0
    _
  %s8 = ssub.s32 1, %s6
  %s9 = scalar_select 0, %s8, %s6
  // Predicated region
  $region2: #{simplenet_forward.1} parent=0 // pred_check
    _
  $region3: #{simplenet_forward.1} parent=0 // pred_check_branch
    %11 = sbr.rel (0) target = $region5
  $region4: #{simplenet_forward.1} parent=0 // pred_region
    _
  $region5: #{simplenet_forward.1} parent=0 // pred_fallthru
    _
  // Predicated region
  $region6: #{simplenet_forward.1} parent=0 // pred_check
    _
  $region7: #{simplenet_forward.1} parent=0 // pred_check_branch
    %13 = sbr.rel (0) target = $region9
  $region8: #{simplenet_forward.1} parent=0 // pred_region
    _
  $region9: #{simplenet_forward.1} parent=0 // pred_fallthru
    _
  // Predicated region
  $region10: #{simplenet_forward.1} parent=0 // pred_check
    _
  $region11: #{simplenet_forward.1} parent=0 // pred_check_branch
    %15 = sbr.rel (0) target = $region13
  $region12: #{simplenet_forward.1} parent=0 // pred_region
    _
  $region13: #{simplenet_forward.1} parent=0 // pred_fallthru
    _
  // Predicated region
  $region14: #{simplenet_forward.1} parent=0 // pred_check
    _
  $region15: #{simplenet_forward.1} parent=0 // pred_check_branch
    %17 = sbr.rel (0) target = $region17
  $region16: #{simplenet_forward.1} parent=0 // pred_region
    _
  $region17: #{simplenet_forward.1} parent=0 // pred_fallthru
    _
  // Predicated region
  $region18: #{simplenet_forward.1} parent=0 // pred_check
    _
  $region19: #{simplenet_forward.1} parent=0 // pred_check_branch
    %19 = sbr.rel (0) target = $region21
  $region20: #{simplenet_forward.1} parent=0 // pred_region
    _
  $region21: #{simplenet_forward.1} parent=0 // pred_fallthru
    _
  %v20 = vld [vmem:[%s0] sm:$0xff]
  %v21 = vld [vmem:[%s1] sm:$0xff]
  %v22 = vld [vmem:[%s1 + $0x8] sm:$0xff]
  %v23 = vld [vmem:[%s2] sm:$0x1]
  %v25 = vlaneseq
  %v26 = vshrl.u32 %v25, 7
  %v27 = vsub.s32 0, %v26
  %v28 = vrot.slane %v23, %v27
  %vm30 = vcmask 130048
  %v32 = vsel %vm30, %v20, 0
  %34 = vmatprep.subr.mxu0 0.0
  %35 = vmatpush1.msra.mxu0 %v21
  %36 = vmatprep.subr.mxu0 0.0
  %37 = vmatpush1.msra.mxu0 %v22
  %38 = vmatprep.subr.mxu0 0.0
  %39 = vmatpush1.msra.mxu0 0.0
  %40 = vmatprep.subr.mxu0 0.0
  %41 = vmatpush1.msra.mxu0 0.0
  %42 = vmatprep.subr.mxu0 0.0
  %43 = vmatpush1.msra.mxu0 0.0
  %44 = vmatprep.subr.mxu0 0.0
  %45 = vmatpush1.msra.mxu0 0.0
  %46 = vmatprep.subr.mxu0 0.0
  %47 = vmatpush1.msra.mxu0 0.0
  %48 = vmatprep.subr.mxu0 0.0
  %49 = vmatpush1.msra.mxu0 0.0
  %50 = vmatprep.subr.mxu0 0.0
  %51 = vmatpush1.msra.mxu0 0.0
  %52 = vmatprep.subr.mxu0 0.0
  %53 = vmatpush1.msra.mxu0 0.0
  %54 = vmatprep.subr.mxu0 0.0
  %55 = vmatpush1.msra.mxu0 0.0
  %56 = vmatprep.subr.mxu0 0.0
  %57 = vmatpush1.msra.mxu0 0.0
  %58 = vmatprep.subr.mxu0 0.0
  %59 = vmatpush1.msra.mxu0 0.0
  %60 = vmatprep.subr.mxu0 0.0
  %61 = vmatpush1.msra.mxu0 0.0
  %62 = vmatprep.subr.mxu0 0.0
  %63 = vmatpush1.msra.mxu0 0.0
  %64 = vmatprep.subr.mxu0 0.0
  %65 = vmatpush1.msra.mxu0 0.0
  %66 = vmatprep.subr.mxu0 0.0
  %67 = vmatpush1.msra.mxu0 0.0
  %68 = vmatprep.subr.mxu0 0.0
  %69 = vmatpush1.msra.mxu0 0.0
  %70 = vmatprep.subr.mxu0 0.0
  %71 = vmatpush1.msra.mxu0 0.0
  %72 = vmatprep.subr.mxu0 0.0
  %73 = vmatpush1.msra.mxu0 0.0
  %74 = vmatprep.subr.mxu0 0.0
  %75 = vmatpush1.msra.mxu0 0.0
  %76 = vmatprep.subr.mxu0 0.0
  %77 = vmatpush1.msra.mxu0 0.0
  %78 = vmatprep.subr.mxu0 0.0
  %79 = vmatpush1.msra.mxu0 0.0
  %80 = vmatprep.subr.mxu0 0.0
  %81 = vmatpush1.msra.mxu0 0.0
  %82 = vmatprep.subr.mxu0 0.0
  %83 = vmatpush1.msra.mxu0 0.0
  %84 = vmatprep.subr.mxu0 0.0
  %85 = vmatpush1.msra.mxu0 0.0
  %86 = vmatprep.subr.mxu0 0.0
  %87 = vmatpush1.msra.mxu0 0.0
  %88 = vmatprep.subr.mxu0 0.0
  %89 = vmatpush1.msra.mxu0 0.0
  %90 = vmatprep.subr.mxu0 0.0
  %91 = vmatpush1.msra.mxu0 0.0
  %92 = vmatprep.subr.mxu0 0.0
  %93 = vmatpush1.msra.mxu0 0.0
  %94 = vmatprep.subr.mxu0 0.0
  %95 = vmatpush1.msra.mxu0 0.0
  %96 = vmatprep.subr.mxu0 0.0
  %97 = vmatpush1.msra.mxu0 0.0
  %98 = vmatprep.mubr.f32.mxu0 0.0
  %99 = vmatmul.mubr.f32.gmra.mrb[0].mxu0 %v32
  %v100 = vpop.f32.mrb[0].mxu0
  %v101 = vadd.f32 %v28, %v100
  %v102 = vpop.f32.mrb[0].mxu0
  %103 = vdwg.mxu0
  %v104 = vxor.u32 %v101, 2147483648
  %v105 = vmul.f32 %v104, 1.442695
  %v106 = vpow.pop %v105
  %v107 = vadd.f32 %v106, 1.0
  %v108 = vrcp.pop %v107
  %v109 = vmul.f32 1.0, %v108
  %v110 = vld [vmem:[%s3] sm:$0xff]
  %v111 = vld [vmem:[%s3 + $0x8] sm:$0xff]
  %v112 = vld [vmem:[%s3 + $0x10] sm:$0xff]
  %v113 = vld [vmem:[%s3 + $0x18] sm:$0xff]
  %v114 = vld [vmem:[%s3 + $0x20] sm:$0xff]
  %v115 = vld [vmem:[%s3 + $0x28] sm:$0xff]
  %v116 = vld [vmem:[%s3 + $0x30] sm:$0xff]
  %v117 = vld [vmem:[%s3 + $0x38] sm:$0xff]
  %v118 = vld [vmem:[%s3 + $0x40] sm:$0xff]
  %v119 = vld [vmem:[%s3 + $0x48] sm:$0xff]
  %v120 = vld [vmem:[%s3 + $0x50] sm:$0xff]
  %v121 = vld [vmem:[%s3 + $0x58] sm:$0xff]
  %v122 = vld [vmem:[%s3 + $0x60] sm:$0xff]
  %v123 = vld [vmem:[%s3 + $0x68] sm:$0xff]
  %v124 = vld [vmem:[%s3 + $0x70] sm:$0xff]
  %v125 = vld [vmem:[%s3 + $0x78] sm:$0xff]
  %v126 = vld [vmem:[%s4] sm:$0x1]
  %v128 = vlaneseq
  %v129 = vshrl.u32 %v128, 7
  %v130 = vsub.s32 0, %v129
  %v131 = vrot.slane %v126, %v130
  %133 = vmatprep.subr.mxu0 0.0
  %134 = vmatpush1.msra.mxu0 %v110
  %135 = vmatprep.subr.mxu0 0.0
  %136 = vmatpush1.msra.mxu0 %v111
  %137 = vmatprep.subr.mxu0 0.0
  %138 = vmatpush1.msra.mxu0 %v112
  %139 = vmatprep.subr.mxu0 0.0
  %140 = vmatpush1.msra.mxu0 %v113
  %141 = vmatprep.subr.mxu0 0.0
  %142 = vmatpush1.msra.mxu0 %v114
  %143 = vmatprep.subr.mxu0 0.0
  %144 = vmatpush1.msra.mxu0 %v115
  %145 = vmatprep.subr.mxu0 0.0
  %146 = vmatpush1.msra.mxu0 %v116
  %147 = vmatprep.subr.mxu0 0.0
  %148 = vmatpush1.msra.mxu0 %v117
  %149 = vmatprep.subr.mxu0 0.0
  %150 = vmatpush1.msra.mxu0 %v118
  %151 = vmatprep.subr.mxu0 0.0
  %152 = vmatpush1.msra.mxu0 %v119
  %153 = vmatprep.subr.mxu0 0.0
  %154 = vmatpush1.msra.mxu0 %v120
  %155 = vmatprep.subr.mxu0 0.0
  %156 = vmatpush1.msra.mxu0 %v121
  %157 = vmatprep.subr.mxu0 0.0
  %158 = vmatpush1.msra.mxu0 %v122
  %159 = vmatprep.subr.mxu0 0.0
  %160 = vmatpush1.msra.mxu0 %v123
  %161 = vmatprep.subr.mxu0 0.0
  %162 = vmatpush1.msra.mxu0 %v124
  %163 = vmatprep.subr.mxu0 0.0
  %164 = vmatpush1.msra.mxu0 %v125
  %165 = vmatprep.subr.mxu0 0.0
  %166 = vmatpush1.msra.mxu0 0.0
  %167 = vmatprep.subr.mxu0 0.0
  %168 = vmatpush1.msra.mxu0 0.0
  %169 = vmatprep.subr.mxu0 0.0
  %170 = vmatpush1.msra.mxu0 0.0
  %171 = vmatprep.subr.mxu0 0.0
  %172 = vmatpush1.msra.mxu0 0.0
  %173 = vmatprep.subr.mxu0 0.0
  %174 = vmatpush1.msra.mxu0 0.0
  %175 = vmatprep.subr.mxu0 0.0
  %176 = vmatpush1.msra.mxu0 0.0
  %177 = vmatprep.subr.mxu0 0.0
  %178 = vmatpush1.msra.mxu0 0.0
  %179 = vmatprep.subr.mxu0 0.0
  %180 = vmatpush1.msra.mxu0 0.0
  %181 = vmatprep.subr.mxu0 0.0
  %182 = vmatpush1.msra.mxu0 0.0
  %183 = vmatprep.subr.mxu0 0.0
  %184 = vmatpush1.msra.mxu0 0.0
  %185 = vmatprep.subr.mxu0 0.0
  %186 = vmatpush1.msra.mxu0 0.0
  %187 = vmatprep.subr.mxu0 0.0
  %188 = vmatpush1.msra.mxu0 0.0
  %189 = vmatprep.subr.mxu0 0.0
  %190 = vmatpush1.msra.mxu0 0.0
  %191 = vmatprep.subr.mxu0 0.0
  %192 = vmatpush1.msra.mxu0 0.0
  %193 = vmatprep.subr.mxu0 0.0
  %194 = vmatpush1.msra.mxu0 0.0
  %195 = vmatprep.subr.mxu0 0.0
  %196 = vmatpush1.msra.mxu0 0.0
  %197 = vmatprep.mubr.f32.mxu0 0.0
  %198 = vmatmul.mubr.f32.gmra.mrb[0].mxu0 %v109
  %v199 = vpop.f32.mrb[0].mxu0
  %v200 = vadd.f32 %v131, %v199
  %v201 = vpop.f32.mrb[0].mxu0
  %202 = vdwg.mxu0
  %vm203 = vcmp.ge.f32.partialorder %v200, 0.0
  %v204 = vmul.f32 %v200, 0.01
  %v205 = vsel %vm203, %v200, %v204
  %vm206 = vcmask 31744
  %207 = vst.msk [vmem:[%s5] sm:$0xff] %vm206, %v205
  // Predicated region
  $region22: #{simplenet_forward.1} parent=0 // pred_check
    _
  $region23: #{simplenet_forward.1} parent=0 // pred_check_branch
    %209 = sbr.rel (0) target = $region25
  $region24: #{simplenet_forward.1} parent=0 // pred_region
    _
  $region25: #{simplenet_forward.1} parent=0 // pred_fallthru
    _
  // Predicated region
  $region26: #{simplenet_forward.1} parent=0 // pred_check
    _
  $region27: #{simplenet_forward.1} parent=0 // pred_check_branch
    %211 = sbr.rel (0) target = $region29
  $region28: #{simplenet_forward.1} parent=0 // pred_region
    _
  $region29: #{simplenet_forward.1} parent=0 // pred_fallthru
    _

</llo_original>
